<compile_context>
chip_gen: v5e
topology: v5e:2x2
jax: 0.10.0
libtpu: 0.0.40
codegen_flags: <defaults>
</compile_context>

<pallas_src>
import functools

import numpy as np
import jax
import jax.numpy as jnp
from jax.experimental import pallas as pl
from jax.experimental.pallas import tpu as pltpu


# ----------------------------------------------------------------------------
# Host-side helpers (cached per shape)
# ----------------------------------------------------------------------------
@functools.lru_cache(maxsize=None)
def _bilinear_weights(dst: int, src: int) -> np.ndarray:
    """cv2-style INTER_LINEAR (half-pixel centers) weight matrix (dst, src)."""
    w = np.zeros((dst, src), dtype=np.float32)
    if src == 1:
        w[:, 0] = 1.0
        return w
    scale = src / dst
    for j in range(dst):
        c = (j + 0.5) * scale - 0.5
        c = min(max(c, 0.0), float(src - 1))
        i0 = int(np.floor(c))
        i1 = min(i0 + 1, src - 1)
        t = c - i0
        w[j, i0] += 1.0 - t
        w[j, i1] += t
    return w


@functools.lru_cache(maxsize=None)
def _wy_device(dst: int, src: int) -> jax.Array:
    """Vertical interp weights (dst, src), bf16 (MXU-native)."""
    return jnp.asarray(_bilinear_weights(dst, src), dtype=jnp.bfloat16)


@functools.lru_cache(maxsize=None)
def _wxt_device(dst: int, src: int) -> jax.Array:
    """Horizontal interp weights, transposed: (src, dst), bf16."""
    return jnp.asarray(_bilinear_weights(dst, src).T, dtype=jnp.bfloat16)


@functools.lru_cache(maxsize=None)
def _vmem_capacity_bytes() -> int:
    """Generation-aware VMEM size (128 MiB on v5e/v6e, 64 MiB per TC on v7x)."""
    try:
        return int(pltpu.get_tpu_info().vmem_capacity_bytes)
    except Exception:
        return 64 * 1024 * 1024   # conservative fallback (v7x per-TC size)


def _pick_nb(n: int, hc: int, wc: int, out: int) -> int:
    """Crops resized per grid step.  Amortizes the ~0.35us per-step overhead
    while (a) keeping double-buffered blocks within ~1/4 of this chip's VMEM
    and (b) keeping >=2 grid steps when n > 1 so v7x megacore can split them."""
    budget = _vmem_capacity_bytes() // 4

    def vmem_bytes(nb):
        crop_blk = nb * hc * wc * 2            # bf16 crops, double-buffered
        out_blk = nb * out * out * 4           # f32 output, double-buffered
        weights = (out * hc + wc * out) * 2    # bf16 weights (nb-independent)
        tmp = out * wc * 4                     # per-crop intermediate
        return 2 * (crop_blk + out_blk + weights) + tmp

    nb = 8
    if n > 1:
        nb = min(nb, -(-n // 2))   # ensure num_blocks >= 2 for v7x's two TCs
    nb = max(1, nb)
    while nb > 1 and vmem_bytes(nb) > budget:
        nb //= 2
    # TODO(synk): if a single crop block still exceeds VMEM (giant crops),
    # tile the contraction dims (Hc, Wc) over a K grid axis with an accumulator.
    return nb


# ----------------------------------------------------------------------------
# Kernel: separable bilinear resize of nb crops per grid step (two bf16
# matmuls per crop on the MXU, f32 accumulation / output).
#   wy_ref    : (out, Hc)       vertical interp weights   (constant over grid)
#   crops_ref : (nb, Hc, Wc)    nb crops for this grid step
#   wxt_ref   : (Wc, out)       horizontal interp weights (constant over grid)
#   out_ref   : (nb, out, out)  nb resized crops
# ----------------------------------------------------------------------------
@functools.lru_cache(maxsize=None)
def _make_resize_call(hc: int, wc: int, out: int, nb: int, num_blocks: int):
    def kernel(wy_ref, crops_ref, wxt_ref, out_ref):
        wy = wy_ref[...]     # (out, hc)  bf16
        wxt = wxt_ref[...]   # (wc, out)  bf16
        for b in range(nb):  # nb is small (<=8): static unroll
            tmp = jnp.dot(wy, crops_ref[b],
                          preferred_element_type=jnp.float32)          # (out, wc)
            out_ref[b] = jnp.dot(tmp.astype(jnp.bfloat16), wxt,
                                 preferred_element_type=jnp.float32)   # (out, out)

    return pl.pallas_call(
        kernel,
        out_shape=jax.ShapeDtypeStruct((num_blocks * nb, out, out), jnp.float32),
        grid=(num_blocks,),
        in_specs=[
            pl.BlockSpec((out, hc), lambda b: (0, 0)),        # Wy   (resident)
            pl.BlockSpec((nb, hc, wc), lambda b: (b, 0, 0)),  # crops
            pl.BlockSpec((wc, out), lambda b: (0, 0)),        # Wx^T (resident)
        ],
        out_specs=pl.BlockSpec((nb, out, out), lambda b: (b, 0, 0)),
        compiler_params=pltpu.CompilerParams(
            dimension_semantics=("parallel",),
            vmem_limit_bytes=_vmem_capacity_bytes() // 2),
    )


def _resize_group(crops: jax.Array, out_size: int) -> jax.Array:
    """crops: (n, Hc, Wc) bf16 -> (n, out, out) f32 with one pallas_call."""
    n, hc, wc = (int(d) for d in crops.shape)
    nb = _pick_nb(n, hc, wc, out_size)
    # Bucket the grid size to a power of two so varying batch sizes at the same
    # crop shape reuse one compiled kernel (compiles dwarf the kernel runtime).
    num_blocks = pl.next_power_of_2(-(-n // nb))
    n_pad = num_blocks * nb
    if n_pad != n:
        crops = jnp.pad(crops, ((0, n_pad - n), (0, 0), (0, 0)))

    call = _make_resize_call(hc, wc, out_size, nb, num_blocks)
    res = call(_wy_device(out_size, hc), crops, _wxt_device(out_size, wc))
    return res[:n]


# ----------------------------------------------------------------------------
# Feeder
# ----------------------------------------------------------------------------
class Feeder:
    """JAX/Pallas port of the PyTorch Feeder.  `resize` is the target square
    size (the original passed an albumentations Resize transform; its bilinear
    resize is reproduced inside the Pallas kernel)."""

    def __init__(self, resize: int):
        self.resize = int(resize)

    def __call__(self, img, bbox, default_size):
        # bbox entries must be host Python ints (as in the PyTorch original,
        # where they are used directly as slice indices).
        if any(x < 0 for x in bbox):
            raise Exception("Bounding box contains invalid values.")
        if all(x == 0 for x in bbox):
            return jnp.zeros(
                (img.shape[0], 1, default_size, default_size), dtype=jnp.float32)

        x, y, w, h = bbox
        shape = img.shape
        img4 = img.reshape(shape[0], -1, shape[-2], shape[-1])
        B = int(img4.shape[0])
        H, W = int(img4.shape[-2]), int(img4.shape[-1])

        x_min, x_max = min(x, w), max(x, w)
        y_min, y_max = min(y, h), max(y, h)

        # Replay the original per-element bound mutation on the host
        # (deterministic Python-int arithmetic, no device work).
        bounds = []
        for _ in range(B):
            h0 = max(0, min(y_max, H) - min(y_min, H))   # current crop height
            w0 = max(0, min(x_max, W) - min(x_min, W))   # current crop width
            if h0 > w0:
                diff = h0 - w0
                x_min = max(0, x_min - diff // 2)
                x_max = min(W, x_max + diff // 2)
            elif w0 > h0:
                diff = w0 - h0
                y_min = max(0, y_min - diff // 2)
                y_max = min(H, y_max + diff // 2)
            y0, y1 = min(y_min, H), min(y_max, H)
            x0, x1 = min(x_min, W), min(x_max, W)
            if y1 <= y0 or x1 <= x0:
                raise Exception("Bounding box produces an empty crop.")
            bounds.append((y0, y1, x0, x1))

        # Group consecutive batch indices sharing the exact crop window
        # (bounds converge after <=2 elements -> at most ~3 groups / compiles).
        groups = []
        for i, bnd in enumerate(bounds):
            if groups and groups[-1][0] == bnd:
                groups[-1][2] += 1
            else:
                groups.append([bnd, i, 1])

        pieces = []
        for (y0, y1, x0, x1), start, count in groups:
            # TODO(synk): fuse this strided crop extraction into the kernel via
            # memory_space=pl.ANY + make_async_copy to save one HBM round trip.
            crops = img4[start:start + count, 0, y0:y1, x0:x1].astype(jnp.bfloat16)
            pieces.append(_resize_group(crops, self.resize))
        return pieces[0] if len(pieces) == 1 else jnp.concatenate(pieces, axis=0)


if __name__ == "__main__":
    key = jax.random.PRNGKey(0)
    B, C, H, W = 2, 1, 16, 16
    img = jax.random.normal(key, (B, C, H, W), dtype=jnp.float32)

    out_size = 32
    feeder = Feeder(resize=out_size)

    # non-degenerate bounding box (x_min, y_min, x_max, y_max)
    bbox = [3, 2, 11, 13]
    out = jax.block_until_ready(feeder(img, bbox, default_size=out_size))
    assert out.shape == (B, out_size, out_size), out.shape
    assert out.dtype == jnp.float32

    # Numeric sanity vs. host-side numpy reference.
    # For bbox=[3,2,11,13] on a 16x16 image the (mutated) crop window for both
    # batch elements is rows 2:13, cols 2:12 (11x10).
    img_np = np.asarray(img)
    wy_np = _bilinear_weights(out_size, 11)
    wx_np = _bilinear_weights(out_size, 10)
    for i in range(B):
        ref = wy_np @ img_np[i, 0, 2:13, 2:12] @ wx_np.T
        np.testing.assert_allclose(np.asarray(out[i]), ref, rtol=5e-2, atol=5e-2)

    # all-zero bbox path -> zeros(B, 1, default_size, default_size)
    z = jax.block_until_ready(feeder(img, [0, 0, 0, 0], default_size=out_size))
    assert z.shape == (B, 1, out_size, out_size), z.shape

    # negative bbox -> exception
    try:
        feeder(img, [-1, 0, 4, 4], default_size=out_size)
        raise AssertionError("expected exception for negative bbox")
    except Exception as e:
        assert "invalid" in str(e)

    print("KERNEL_OK")
</pallas_src>

<mosaic_0001>
module attributes {stable_mosaic.version = 11 : i64} {
  func.func @kernel(%arg0: i32, %arg1: memref<32x11xbf16, #tpu.memory_space<vmem>>, %arg2: memref<1x11x10xbf16, #tpu.memory_space<vmem>>, %arg3: memref<10x32xbf16, #tpu.memory_space<vmem>>, %arg4: memref<1x32x32xf32, #tpu.memory_space<vmem>>) attributes {dimension_semantics = [#tpu.dimension_semantics<parallel>], iteration_bounds = array<i64: 2>, scalar_prefetch = 0 : i64, scratch_operands = 0 : i64, tpu.core_type = #tpu.core_type<tc>, window_params = [{pipeline_mode = #tpu.pipeline_mode<synchronous>, transform_indices = @transform_0, window_bounds = array<i64: 32, 11>}, {transform_indices = @transform_1, window_bounds = array<i64: 1, 11, 10>}, {pipeline_mode = #tpu.pipeline_mode<synchronous>, transform_indices = @transform_2, window_bounds = array<i64: 10, 32>}, {transform_indices = @transform_3, window_bounds = array<i64: 1, 32, 32>}]} {
    %c0 = arith.constant 0 : index
    %c0_0 = arith.constant 0 : index
    %0 = vector.load %arg1[%c0, %c0_0] : memref<32x11xbf16, #tpu.memory_space<vmem>>, vector<32x11xbf16>
    %c0_1 = arith.constant 0 : index
    %c0_2 = arith.constant 0 : index
    %1 = vector.load %arg3[%c0_1, %c0_2] : memref<10x32xbf16, #tpu.memory_space<vmem>>, vector<10x32xbf16>
    %c0_3 = arith.constant 0 : index
    %c0_4 = arith.constant 0 : index
    %c0_5 = arith.constant 0 : index
    %2 = vector.load %arg2[%c0_3, %c0_4, %c0_5] : memref<1x11x10xbf16, #tpu.memory_space<vmem>>, vector<1x11x10xbf16>
    %3 = vector.shape_cast %2 : vector<1x11x10xbf16> to vector<11x10xbf16>
    %cst = arith.constant dense<0.000000e+00> : vector<32x10xf32>
    %4 = tpu.matmul %0, %3, %cst {dimension_numbers = #tpu.dot_dimension_numbers<[1], [0], [0], [1], [0, 0, 1, 1], [], []>} : vector<32x11xbf16>, vector<11x10xbf16>, vector<32x10xf32> -> vector<32x10xf32>
    %5 = arith.truncf %4 : vector<32x10xf32> to vector<32x10xbf16>
    %cst_6 = arith.constant dense<0.000000e+00> : vector<32x32xf32>
    %6 = tpu.matmul %5, %1, %cst_6 {dimension_numbers = #tpu.dot_dimension_numbers<[1], [0], [0], [1], [0, 0, 1, 1], [], []>} : vector<32x10xbf16>, vector<10x32xbf16>, vector<32x32xf32> -> vector<32x32xf32>
    %c0_7 = arith.constant 0 : index
    %c0_8 = arith.constant 0 : index
    %c0_9 = arith.constant 0 : index
    %7 = vector.load %arg4[%c0_7, %c0_8, %c0_9] : memref<1x32x32xf32, #tpu.memory_space<vmem>>, vector<1x32x32xf32>
    %8 = vector.shape_cast %7 : vector<1x32x32xf32> to vector<32x32xf32>
    %9 = vector.shape_cast %6 : vector<32x32xf32> to vector<1x32x32xf32>
    tpu.vector_store %arg4[%c0_7, %c0_8, %c0_9], %9 {strides = array<i32>} : memref<1x32x32xf32, #tpu.memory_space<vmem>>, vector<1x32x32xf32>,
    return
  }
  func.func @transform_0(%arg0: i32) -> (i32, i32) {
    %c0_i32 = arith.constant 0 : i32
    %c0_i32_0 = arith.constant 0 : i32
    %c0_i32_1 = arith.constant 0 : i32
    return %c0_i32, %c0_i32_0 : i32, i32
  }
  func.func @transform_1(%arg0: i32) -> (i32, i32, i32) {
    %c0_i32 = arith.constant 0 : i32
    %c0_i32_0 = arith.constant 0 : i32
    %c0_i32_1 = arith.constant 0 : i32
    return %arg0, %c0_i32, %c0_i32_0 : i32, i32, i32
  }
  func.func @transform_2(%arg0: i32) -> (i32, i32) {
    %c0_i32 = arith.constant 0 : i32
    %c0_i32_0 = arith.constant 0 : i32
    %c0_i32_1 = arith.constant 0 : i32
    return %c0_i32, %c0_i32_0 : i32, i32
  }
  func.func @transform_3(%arg0: i32) -> (i32, i32, i32) {
    %c0_i32 = arith.constant 0 : i32
    %c0_i32_0 = arith.constant 0 : i32
    %c0_i32_1 = arith.constant 0 : i32
    return %arg0, %c0_i32, %c0_i32_0 : i32, i32, i32
  }
}

</mosaic_0001>

<llo_original>
// kernel: tpu_custom_call.1
$region0: #{tpu_custom_call.1}
  #allocation0 [shape = 'u32[]', space=smem, size = 0x4, offset = 0x4, fixed_abs, tag = 'smem constant byte address 0x4 - core index']
  #allocation1 [shape = 'u32[72,128]{1,0:T(1,128)}', space=vmem, size = 0x9000, scoped, tag = 'internal scratch']
  %s0 = inlined_call_operand.vmem [shape: bf16[32,11], index: 0, kind: input, shape index: {}]
  %s1 = inlined_call_operand.vmem [shape: bf16[2,11,10], index: 1, kind: input, shape index: {}]
  %s2 = inlined_call_operand.vmem [shape: bf16[10,32], index: 2, kind: input, shape index: {}]
  %s3 = inlined_call_operand.hbm [shape: f32[2,32,32], index: 3, kind: output, shape index: {}]
  %s4 = sld [smem:[#allocation0]]
  $region45: #{tpu_custom_call.1} parent=0
    _
  %s6 = ssub.s32 1, %s4
  %s7 = scalar_select 0, %s6, %s4
  $region1: #{tpu_custom_call.1} parent=0
    #allocation2 [shape = 'u8[32768]{0}', space=vmem, size = 0x8000, scoped, tag = 'output window, operand 0']
    #allocation3 [shape = 's32[2]{0}', space=sflag, size = 0x8, scoped, tag = 'scoped memory for tpu_custom_call.1']
    %8 = vsyncpa [#allocation3], 0
    %s9 = scalar_lea.sflag [#allocation3], 1
    %10 = vsyncpa %s9, 0
    loop: start=0, step=1, limit=4
    $region2: #{tpu_custom_call.1} parent=1 // loop_pre_header
      _
    $region3: #{tpu_custom_call.1} parent=1 // loop_header
      %s12 = sphi 0, %s16
      %p13 = scmp.ge.s32.totalorder %s12, 4
      %s20 = sphi 0, %s20
      %s22 = sphi 0, %s20
      %s23 = sphi 0, %s22
      %s37 = sphi 0, %s23
      %s43 = sphi 0, %s45
      %s46 = sphi 0, %s43
      %s47 = sphi 0, %s46
      %s63 = sphi 0, %s47
      %s67 = sphi 0, %s67
      %s69 = sphi 0, %s67
      %s70 = sphi 0, %s69
      %s84 = sphi 0, %s70
      %s90 = sphi 0, %s92
      %s93 = sphi 0, %s90
      %s94 = sphi 0, %s93
      %s110 = sphi 0, %s94
    $region4: #{tpu_custom_call.1} parent=1 // loop_header_branch
      %15 = sbr.rel (%p13) target = $region8
    $region5: #{tpu_custom_call.1} parent=1 // loop_body
      %s17 = ssub.s32 %s12, 1
      %s18 = ssub.s32 %s12, 2
      %s19 = sadd.s32 %s12, 1
      %s21 = sadd.s32 %s20, 1
      %p24 = scmp.eq.s32.totalorder %s12, 1
      %p25 = scmp.ne.s32.totalorder %s20, %s22
      %p26 = scmp.eq.s32.totalorder %s12, 0
      %p27 = por %p25, %p26
      %p28 = scmp.ne.s32.totalorder %s20, %s22
      %p29 = scmp.eq.s32.totalorder %s17, 1
      %p30 = por %p28, %p29
      %p31 = scmp.ne.s32.totalorder %s22, %s23
      %p32 = scmp.eq.s32.totalorder %s17, 0
      %p33 = por %p31, %p32
      %p34 = scmp.ne.s32.totalorder %s22, %s23
      %p35 = scmp.eq.s32.totalorder %s18, 1
      %p36 = por %p34, %p35
      %p38 = scmp.ne.s32.totalorder %s23, %s37
      %p39 = scmp.eq.s32.totalorder %s18, 0
      %p40 = por %p38, %p39
      %s41 = ssub.s32 %s12, %s19
      %p42 = scmp.eq.s32.totalorder %s41, 0
      %s44 = sadd.s32 %s43, 1
      %s45 = scalar_select %p42, %s43, %s44
      %p48 = pneg %p42
      %p49 = scmp.eq.s32.totalorder %s12, 1
      %p50 = por %p48, %p49
      %p51 = scmp.ne.s32.totalorder %s43, %s46
      %p52 = scmp.eq.s32.totalorder %s12, 0
      %p53 = por %p51, %p52
      %p54 = scmp.ne.s32.totalorder %s43, %s46
      %p55 = scmp.eq.s32.totalorder %s17, 1
      %p56 = por %p54, %p55
      %p57 = scmp.ne.s32.totalorder %s46, %s47
      %p58 = scmp.eq.s32.totalorder %s17, 0
      %p59 = por %p57, %p58
      %p60 = scmp.ne.s32.totalorder %s46, %s47
      %p61 = scmp.eq.s32.totalorder %s18, 1
      %p62 = por %p60, %p61
      %p64 = scmp.ne.s32.totalorder %s47, %s63
      %p65 = scmp.eq.s32.totalorder %s18, 0
      %p66 = por %p64, %p65
      %s68 = sadd.s32 %s67, 1
      %p71 = scmp.eq.s32.totalorder %s12, 1
      %p72 = scmp.ne.s32.totalorder %s67, %s69
      %p73 = scmp.eq.s32.totalorder %s12, 0
      %p74 = por %p72, %p73
      %p75 = scmp.ne.s32.totalorder %s67, %s69
      %p76 = scmp.eq.s32.totalorder %s17, 1
      %p77 = por %p75, %p76
      %p78 = scmp.ne.s32.totalorder %s69, %s70
      %p79 = scmp.eq.s32.totalorder %s17, 0
      %p80 = por %p78, %p79
      %p81 = scmp.ne.s32.totalorder %s69, %s70
      %p82 = scmp.eq.s32.totalorder %s18, 1
      %p83 = por %p81, %p82
      %p85 = scmp.ne.s32.totalorder %s70, %s84
      %p86 = scmp.eq.s32.totalorder %s18, 0
      %p87 = por %p85, %p86
      %s88 = ssub.s32 %s12, %s19
      %p89 = scmp.eq.s32.totalorder %s88, 0
      %s91 = sadd.s32 %s90, 1
      %s92 = scalar_select %p89, %s90, %s91
      %p95 = pneg %p89
      %p96 = scmp.eq.s32.totalorder %s12, 1
      %p97 = por %p95, %p96
      %p98 = scmp.ne.s32.totalorder %s90, %s93
      %p99 = scmp.eq.s32.totalorder %s12, 0
      %p100 = por %p98, %p99
      %p101 = scmp.ne.s32.totalorder %s90, %s93
      %p102 = scmp.eq.s32.totalorder %s17, 1
      %p103 = por %p101, %p102
      %p104 = scmp.ne.s32.totalorder %s93, %s94
      %p105 = scmp.eq.s32.totalorder %s17, 0
      %p106 = por %p104, %p105
      %p107 = scmp.ne.s32.totalorder %s93, %s94
      %p108 = scmp.eq.s32.totalorder %s18, 1
      %p109 = por %p107, %p108
      %p111 = scmp.ne.s32.totalorder %s94, %s110
      %p112 = scmp.eq.s32.totalorder %s18, 0
      %p113 = por %p111, %p112
      %p114 = scmp.le.s32.totalorder 1, %s12
      %p115 = scmp.lt.s32.totalorder %s12, 3
      %p116 = pnand %p114, %p115
      %p117 = pneg %p116
      // Predicated region
      $region9: #{tpu_custom_call.1} parent=5 // pred_check
        _
      $region10: #{tpu_custom_call.1} parent=5 // pred_check_branch
        %119 = sbr.rel (%p116) target = $region12
      $region11: #{tpu_custom_call.1} parent=5 // pred_region
        %s120 = ssub.s32 %s12, 1
        // Predicated region
        $region13: #{tpu_custom_call.1} parent=11 // pred_check
          %p121 = pneg %p33
        $region14: #{tpu_custom_call.1} parent=11 // pred_check_branch
          %123 = sbr.rel (%p121) target = $region16
        $region15: #{tpu_custom_call.1} parent=11 // pred_region
          _
        $region16: #{tpu_custom_call.1} parent=11 // pred_fallthru
          _
        // Predicated region
        $region17: #{tpu_custom_call.1} parent=11 // pred_check
          %p124 = pneg %p80
        $region18: #{tpu_custom_call.1} parent=11 // pred_check_branch
          %126 = sbr.rel (%p124) target = $region20
        $region19: #{tpu_custom_call.1} parent=11 // pred_region
          _
        $region20: #{tpu_custom_call.1} parent=11 // pred_fallthru
          _
      $region12: #{tpu_custom_call.1} parent=5 // pred_fallthru
        _
      %p127 = scmp.lt.s32.totalorder %s12, 2
      // Predicated region
      $region21: #{tpu_custom_call.1} parent=5 // pred_check
        %p128 = pneg %p127
      $region22: #{tpu_custom_call.1} parent=5 // pred_check_branch
        %130 = sbr.rel (%p128) target = $region24
      $region23: #{tpu_custom_call.1} parent=5 // pred_region
        // Predicated region
        $region25: #{tpu_custom_call.1} parent=23 // pred_check
          %p131 = pneg %p53
        $region26: #{tpu_custom_call.1} parent=23 // pred_check_branch
          %133 = sbr.rel (%p131) target = $region28
        $region27: #{tpu_custom_call.1} parent=23 // pred_region
          %p134 = scmp.lt.s32.totalorder %s12, 1
          %s135 = scalar_select %p134, %s12, 1
          %s136 = smul.addr %s135, 2
          %s137 = smul.addr %s136, 4
          %s138 = scalar_lea.vmem %s1, %s137
        $region28: #{tpu_custom_call.1} parent=23 // pred_fallthru
          _
      $region24: #{tpu_custom_call.1} parent=5 // pred_fallthru
        _
      %p139 = scmp.le.s32.totalorder 1, %s12
      %p140 = scmp.lt.s32.totalorder %s12, 3
      %p141 = pnand %p139, %p140
      %p142 = pneg %p141
      // Predicated region
      $region29: #{tpu_custom_call.1} parent=5 // pred_check
        _
      $region30: #{tpu_custom_call.1} parent=5 // pred_check_branch
        %144 = sbr.rel (%p141) target = $region32
      $region31: #{tpu_custom_call.1} parent=5 // pred_region
        %s145 = ssub.s32 %s12, 1
        %p146 = pneg %p33
        %p147 = pneg %p30
        %p148 = scmp.lt.s32.totalorder %s17, 1
        %s149 = scalar_select %p148, %s17, 1
        %s150 = smul.addr %s149, 2
        %s151 = smul.addr %s150, 4
        %s152 = scalar_lea.vmem %s1, %s151
        %p153 = pneg %p59
        %p154 = pneg %p56
        %p155 = pneg %p80
        %p156 = pneg %p77
        %p157 = pneg %p106
        %p158 = pneg %p103
        %s159 = sand.u32 %s93, 1
        %s160 = scalar_lea.sflag [#allocation3], %s159
        %s161 = sand.u32 %s93, 1
        %s162 = smul.addr %s161, 32
        %s163 = scalar_lea.vmem [#allocation2], %s162
        %p164 = scmp.lt.s32.totalorder %s17, 1
        %s165 = scalar_select %p164, %s17, 1
        %s166 = smul.addr %s165, 2
        %s167 = smul.addr %s166, 4
        %s168 = scalar_lea.vmem %s1, %s167
        %v170 = vld [vmem:[%s0] sm:$0xf]
        %v171 = vld [vmem:[%s0 + $0x4] sm:$0xf]
        %v172 = vld [vmem:[%s0 + $0x8] sm:$0xf]
        %v173 = vld [vmem:[%s0 + $0xc] sm:$0xf]
        %v174 = vld [vmem:[%s2] sm:$0xf]
        %v175 = vld [vmem:[%s2 + $0x4] sm:$0x1]
        %v176 = vld [vmem:[%s168] sm:$0xf]
        %v177 = vld [vmem:[%s168 + $0x4] sm:$0x3]
        %v182 = vunpack.c.l.b16 %v170
        %v183 = vunpack.c.l.b16 %v171
        %v184 = vunpack.c.l.b16 %v172
        %v185 = vunpack.c.l.b16 %v173
        %v186 = vpack.c.b16 %v183, %v182
        %v187 = vpack.c.b16 %v185, %v184
        %v190 = vunpack.c.l.b16 %v176
        %v191 = vunpack.c.l.b16 %v177
        %v192 = vpack.c.b16 %v191, %v190
        %vm193 = vcmask 89088
        %v195 = vsel %vm193, %v186, 0
        %v198 = vsel %vm193, %v187, 0
        %vm200 = vcmask 1044480
        %vm201 = vcmask 1045504
        %v202 = vsel %vm200, 4294967295, 65535
        %v203 = vsel %vm201, %v202, 0
        %v205 = vand.u32 %v192, %v203
        %207 = vmatpush.bf16.msra.mxu0 0
        %208 = vmatpush.bf16.msra.mxu0 0
        %209 = vmatpush.bf16.msra.mxu0 0
        %210 = vmatpush.bf16.msra.mxu0 0
        %211 = vmatpush.bf16.msra.mxu0 0
        %212 = vmatpush.bf16.msra.mxu0 0
        %213 = vmatpush.bf16.msra.mxu0 0
        %214 = vmatpush.bf16.msra.mxu0 %v205
        %215 = vmatmul.bf16.gmra.mxu0 %v195
        %v216 = vpop.f32.mrf.mxu0
        %v217 = vadd.f32 0.0, %v216
        %v218 = vpop.f32.mrf.mxu0
        %v219 = vadd.f32 0.0, %v218
        %220 = vmatmul.bf16.gmra.mxu0 %v198
        %v221 = vpop.f32.mrf.mxu0
        %v222 = vadd.f32 0.0, %v221
        %v223 = vpop.f32.mrf.mxu0
        %v224 = vadd.f32 0.0, %v223
        %225 = vdwg.mxu0
        %v226 = vpack.c.bf16 %v219, %v217
        %v227 = vpack.c.bf16 %v224, %v222
        %v230 = vunpack.c.l.b16 %v174
        %v231 = vunpack.c.l.b16 %v175
        %v232 = vpack.c.b16 %v231, %v230
        %vm233 = vcmask 80896
        %v235 = vsel %vm233, %v226, 0
        %v238 = vsel %vm233, %v227, 0
        %v241 = vsel %vm200, %v232, 0
        %243 = vmatpush.bf16.msra.mxu0 0
        %244 = vmatpush.bf16.msra.mxu0 0
        %245 = vmatpush.bf16.msra.mxu0 0
        %246 = vmatpush.bf16.msra.mxu0 0
        %247 = vmatpush.bf16.msra.mxu0 0
        %248 = vmatpush.bf16.msra.mxu0 0
        %249 = vmatpush.bf16.msra.mxu0 0
        %250 = vmatpush.bf16.msra.mxu0 %v241
        %251 = vmatmul.bf16.gmra.mxu0 %v235
        %v252 = vpop.f32.mrf.mxu0
        %v253 = vadd.f32 0.0, %v252
        %v254 = vpop.f32.mrf.mxu0
        %v255 = vadd.f32 0.0, %v254
        %256 = vmatmul.bf16.gmra.mxu0 %v238
        %v257 = vpop.f32.mrf.mxu0
        %v258 = vadd.f32 0.0, %v257
        %v259 = vpop.f32.mrf.mxu0
        %v260 = vadd.f32 0.0, %v259
        %261 = vdwg.mxu0
        %vm262 = vcmask 261120
        %263 = vst.msk [vmem:[%s163] sm:$0xff] %vm262, %v253
        %264 = vst.msk [vmem:[%s163 + $0x8] sm:$0xff] %vm262, %v255
        %265 = vst.msk [vmem:[%s163 + $0x10] sm:$0xff] %vm262, %v258
        %266 = vst.msk [vmem:[%s163 + $0x18] sm:$0xff] %vm262, %v260
        %s267 = sand.u32 %s93, 1
        %s268 = scalar_lea.sflag [#allocation3], %s267
        %s269 = sand.u32 %s93, 1
        %s270 = smul.addr %s269, 32
        %s271 = scalar_lea.vmem [#allocation2], %s270
        // Predicated region
        $region33: #{tpu_custom_call.1} parent=31 // pred_check
          %p272 = pneg %p103
        $region34: #{tpu_custom_call.1} parent=31 // pred_check_branch
          %274 = sbr.rel (%p272) target = $region36
        $region35: #{tpu_custom_call.1} parent=31 // pred_region
          %276 = vsyncadd %s268, 0
          %s277 = smul.addr %s17, 4
          %s278 = smul.addr %s277, 8
          %s279 = scalar_lea.hbm %s3, %s278
          %s280 = sshll.u32 %s271, 4
          %s281 = int_to_ptr.vmem [resolvable:$true] %s280
          %s282 = sshll.u32 %s279, 4
          %s283 = int_to_ptr.hbm [resolvable:$true] %s282
          %288 = dma.vmem_to_hbm [thread:$0]  %s281, 512, %s283, %s268, 128, 128, 8
        $region36: #{tpu_custom_call.1} parent=31 // pred_fallthru
          _
      $region32: #{tpu_custom_call.1} parent=5 // pred_fallthru
        _
      %p289 = scmp.le.s32.totalorder 2, %s12
      // Predicated region
      $region37: #{tpu_custom_call.1} parent=5 // pred_check
        %p290 = pneg %p289
      $region38: #{tpu_custom_call.1} parent=5 // pred_check_branch
        %292 = sbr.rel (%p290) target = $region40
      $region39: #{tpu_custom_call.1} parent=5 // pred_region
        %s293 = ssub.s32 %s12, 2
        // Predicated region
        $region41: #{tpu_custom_call.1} parent=39 // pred_check
          %p294 = pneg %p109
        $region42: #{tpu_custom_call.1} parent=39 // pred_check_branch
          %296 = sbr.rel (%p294) target = $region44
        $region43: #{tpu_custom_call.1} parent=39 // pred_region
          %s297 = sand.u32 %s94, 1
          %s298 = scalar_lea.sflag [#allocation3], %s297
          %s299 = sand.u32 %s94, 1
          %s300 = smul.addr %s299, 32
          %s301 = scalar_lea.vmem [#allocation2], %s300
          %303 = dma.done %s298, 512
        $region44: #{tpu_custom_call.1} parent=39 // pred_fallthru
          _
      $region40: #{tpu_custom_call.1} parent=5 // pred_fallthru
        _
    $region6: #{tpu_custom_call.1} parent=1 // loop_footer
      %s16 = sadd.s32 1, %s12
    $region7: #{tpu_custom_call.1} parent=1 // loop_footer_branch
      %11 = sbr.rel target = $region3
    $region8: #{tpu_custom_call.1} parent=1 // loop_exit
      _
    %304 = vsyncpa [#allocation3], 1
    %s305 = scalar_lea.sflag [#allocation3], 1
    %306 = vsyncpa %s305, 1

</llo_original>
